<compile_context>
chip_gen: v5e
topology: v5e:2x2
jax: 0.10.0
libtpu: 0.0.40
codegen_flags: <defaults>
</compile_context>

<pallas_src>
import functools
import math

import jax
import jax.numpy as jnp
from jax.experimental import pallas as pl
from jax.experimental.pallas import tpu as pltpu


# ----------------------------------------------------------------------------
# Pallas kernel: out_tile = act( x_tile @ W_bd + b )
#   x_tile : (TM, G*F)    G row-groups of folded adapter input (F = 1 or 2)
#   W_bd   : (G*F, G*E)   block-diagonal kron(I_G, P @ W^T), fp32 in HBM
#   b      : (1, G*E)     bias tiled G times, fp32
#   out    : (TM, G*E)    lane-dense output tile (G*E is a multiple of 128)
# ----------------------------------------------------------------------------
def _edge_adapter_kernel(x_ref, w_ref, b_ref, o_ref, *, activation, mxu_dtype):
    x = x_ref[...]
    w = w_ref[...]
    if mxu_dtype is not None:
        # Single-pass MXU matmul (bf16 operands), fp32 accumulation.
        x = x.astype(mxu_dtype)
        w = w.astype(mxu_dtype)
    acc = jnp.dot(x, w, preferred_element_type=jnp.float32)
    acc = acc + b_ref[...]
    if activation == "relu":
        acc = jnp.maximum(acc, 0.0)
    elif activation == "gelu":
        acc = jax.nn.gelu(acc)
    o_ref[...] = acc.astype(o_ref.dtype)


# ----------------------------------------------------------------------------
# Generation-aware tiling defaults.
# ----------------------------------------------------------------------------
@functools.lru_cache(maxsize=None)
def _tpu_tiling_defaults():
    """Returns (target_block_bytes, vmem_limit_bytes or None)."""
    kind = ""
    try:
        kind = jax.devices()[0].device_kind.lower()
    except Exception:
        pass
    if "v5 lite" in kind or "v5e" in kind or "v5lite" in kind:
        # Single TC, 0.82 TB/s HBM: per-step overhead is already small; the
        # 16 MiB scoped default is the constraint -> raise it explicitly so
        # 2x-buffered 4 MiB blocks + the matmul temp fit.
        return 4 << 20, 32 << 20
    if "v2" in kind or "v3" in kind:
        # Tiny-VMEM legacy parts: stay small, keep the compiler default limit.
        return 2 << 20, None
    # v6e / v7x (and v4-class): ~6 MiB blocks cut the ~0.35 us per-grid-step
    # overhead below ~10% at 1.4-3.2 TB/s; 40 MiB scoped VMEM covers
    # 2x-buffered output blocks + Mosaic matmul temporary + inputs while
    # staying under v7x's 64 MiB physical VMEM per TensorCore.
    return 6 << 20, 40 << 20


def _pick_fold(E, max_lanes=512):
    """Lane-folding factor G: group G consecutive rows so the output tile's
    last dim is G*E, a multiple of 128 (up to ~max_lanes)."""
    g0 = 128 // math.gcd(E, 128)      # smallest G with (G*E) % 128 == 0
    G = g0
    while G * 2 * E <= max_lanes:
        G *= 2
    return G


def _pick_tm(Mg, lanes, target_block_bytes, min_grid=2):
    """M-tile (in folded rows): target-sized output blocks, multiple of 8,
    but keep >= min_grid grid steps on large inputs (pipelining; 2 TCs on
    v7x)."""
    if Mg <= 8:
        return Mg                                   # single full-dim block
    tm = max(8, (target_block_bytes // (lanes * 4)) // 8 * 8)
    cap = max(8, (((Mg + min_grid - 1) // min_grid) + 7) // 8 * 8)
    return min(tm, cap)


def _project_edges(x, P, W, b, *, activation="relu",
                   out_dtype=jnp.float32, mxu_dtype=jnp.bfloat16):
    """Fused act((x @ P) @ W^T + b).  x: (..., F), P: (F, L), W: (E, L)."""
    orig_shape = x.shape
    F = orig_shape[-1]
    E = W.shape[0]
    M = 1
    for d in orig_shape[:-1]:
        M *= d

    # (1) pre-fold low-rank adapter into the projection: one (F, E) weight.
    W_eff = P.astype(jnp.float32) @ W.T.astype(jnp.float32)          # (F, E)

    # (2) lane-fold G consecutive rows -> block-diagonal weight, tiled bias.
    #     If M is not a multiple of G, pad a handful of rows (always lane-dense;
    #     no lane-sparse masked-store fallback).
    G = _pick_fold(E)
    lanes = G * E
    M_pad = ((M + G - 1) // G) * G
    x_flat = x.reshape(M, F)              # native dtype: no wrapper upcast/copy
    if M_pad != M:
        x_flat = jnp.pad(x_flat, ((0, M_pad - M), (0, 0)))
    Mg = M_pad // G
    x_fold = x_flat.reshape(Mg, G * F)    # contiguous (free) view

    W_bd = jnp.kron(jnp.eye(G, dtype=jnp.float32), W_eff)            # (G*F, G*E)
    b_bd = jnp.tile(b.astype(jnp.float32), G).reshape(1, lanes)

    target_block_bytes, vmem_limit = _tpu_tiling_defaults()
    tm = _pick_tm(Mg, lanes, target_block_bytes)
    grid = (pl.cdiv(Mg, tm),)   # ragged last block handled by Pallas masking

    cp_kwargs = dict(dimension_semantics=("parallel",))
    if vmem_limit is not None:
        cp_kwargs["vmem_limit_bytes"] = vmem_limit

    kernel = functools.partial(_edge_adapter_kernel,
                               activation=activation, mxu_dtype=mxu_dtype)
    out = pl.pallas_call(
        kernel,
        out_shape=jax.ShapeDtypeStruct((Mg, lanes), out_dtype),
        grid=grid,
        in_specs=[
            pl.BlockSpec((tm, G * F), lambda i: (i, 0)),
            pl.BlockSpec((G * F, lanes), lambda i: (0, 0)),
            pl.BlockSpec((1, lanes), lambda i: (0, 0)),
        ],
        out_specs=pl.BlockSpec((tm, lanes), lambda i: (i, 0)),
        compiler_params=pltpu.CompilerParams(**cp_kwargs),
    )(x_fold, W_bd, b_bd)

    # (Mg, G*E) -> (M_pad, E) is a contiguous (free) reshape back to row order;
    # drop the few padded rows if any.
    out = out.reshape(M_pad, E)
    if M_pad != M:
        out = out[:M]
    return out.reshape(orig_shape[:-1] + (E,))


# ----------------------------------------------------------------------------
# EdgeAdapter parameters + forward (glue in plain JAX, hot path in Pallas).
# ----------------------------------------------------------------------------
def init_edge_adapter_params(key, dim_emb, adapter_low_dim=4,
                             is_finetuning=False):
    params = {}
    base = {
        "tsp": 2, "cvrp": 2, "cvrptw": 2, "op": 2, "mvc": 1, "upms": 1,
        "jssp1": 2, "jssp2": 1,
    }
    if is_finetuning:
        base.update({
            "trp": 1, "sop": 2, "pctsp": 1, "ocvrp": 2, "dcvrp": 2,
            "sdcvrp": 2, "mis": 1, "mclp": 1, "ossp1": 1, "ossp2": 1,
        })
    for name, rows in base.items():
        params[name] = jnp.ones((rows, adapter_low_dim), jnp.float32)

    kw, kb = jax.random.split(key)
    bound = 1.0 / jnp.sqrt(adapter_low_dim)
    # nn.Linear(adapter_low_dim, dim_emb): weight (dim_emb, low), bias (dim_emb,)
    params["proj_w"] = jax.random.uniform(
        kw, (dim_emb, adapter_low_dim), jnp.float32, -bound, bound)
    params["proj_b"] = jax.random.uniform(
        kb, (dim_emb,), jnp.float32, -bound, bound)
    return params


def edge_adapter_forward(params, edge_features, problem_data,
                         activation="relu", out_dtype=jnp.float32,
                         mxu_dtype=jnp.bfloat16):
    problem_name = problem_data["problem_name"]
    W = params["proj_w"]             # (dim_emb, low)
    b = params["proj_b"]             # (dim_emb,)
    kw = dict(activation=activation, out_dtype=out_dtype, mxu_dtype=mxu_dtype)

    if edge_features is None:
        return None
    elif problem_name in ("jssp", "ossp"):
        p1 = params["jssp1"] if problem_name == "jssp" else params["ossp1"]
        p2 = params["jssp2"] if problem_name == "jssp" else params["ossp2"]
        edge_emb1 = _project_edges(edge_features[0], p1, W, b, **kw)
        edge_emb2 = _project_edges(edge_features[1], p2, W, b, **kw)
        # Transposed embedding: transpose the narrow (F<=2) input and re-run
        # the lane-dense kernel (each E-wide layout is written to HBM exactly
        # once), instead of an XLA swapaxes pass over the E-wide output.
        # TODO(synk): a dual-output pallas_call over a (B, n, m)-aware grid with
        # a swapped out_spec index_map would also fold away the second matmul.
        edge_emb2_t = _project_edges(jnp.swapaxes(edge_features[1], 1, 2),
                                     p2, W, b, **kw)
        return [edge_emb1, None, edge_emb2_t, edge_emb2]
    elif problem_name == "upms":
        edge_emb = _project_edges(edge_features, params["upms"], W, b, **kw)
        edge_emb_t = _project_edges(jnp.swapaxes(edge_features, 1, 2),
                                    params["upms"], W, b, **kw)
        return [None, None, edge_emb_t, edge_emb]
    else:
        return _project_edges(edge_features, params[problem_name], W, b, **kw)


# ----------------------------------------------------------------------------
# Pure-JAX reference for validation.
# ----------------------------------------------------------------------------
def _ref_project(x, P, Wt, b):
    return jnp.maximum(x @ P @ Wt + b, 0.0)


if __name__ == "__main__":
    dim_emb = 32
    adapter_low_dim = 4
    key = jax.random.PRNGKey(0)
    kp, k1, k2, k3, k4 = jax.random.split(key, 5)

    params = init_edge_adapter_params(kp, dim_emb, adapter_low_dim)
    Wt = params["proj_w"].T
    b = params["proj_b"]

    # 1) generic branch ('tsp'), default fast path: bf16 MXU operands,
    #    fp32 accumulation + fp32 output.
    x_tsp = jax.random.normal(k1, (2, 16, 16, 2), jnp.float32)
    out_tsp = edge_adapter_forward(params, x_tsp, {"problem_name": "tsp"})
    jax.block_until_ready(out_tsp)
    ref_tsp = _ref_project(x_tsp, params["tsp"], Wt, b)
    assert out_tsp.shape == (2, 16, 16, dim_emb)
    assert jnp.allclose(out_tsp, ref_tsp, rtol=5e-2, atol=1e-1)

    # 2) same branch, full-precision MXU (mxu_dtype=None): strict parity with
    #    the fp32 PyTorch module.
    out_tsp_hi = edge_adapter_forward(params, x_tsp, {"problem_name": "tsp"},
                                      mxu_dtype=None)
    jax.block_until_ready(out_tsp_hi)
    assert jnp.allclose(out_tsp_hi, ref_tsp, atol=1e-5)

    # 3) 'mvc' (F=1) at a shape that exercises row padding + the ragged last
    #    grid block; strict parity.
    x_mvc = jax.random.normal(k4, (2, 10, 10, 1), jnp.float32)
    out_mvc = edge_adapter_forward(params, x_mvc, {"problem_name": "mvc"},
                                   mxu_dtype=None)
    jax.block_until_ready(out_mvc)
    ref_mvc = _ref_project(x_mvc, params["mvc"], Wt, b)
    assert out_mvc.shape == (2, 10, 10, dim_emb)
    assert jnp.allclose(out_mvc, ref_mvc, atol=1e-5)

    # 4) jssp branch: two edge-feature tensors + transposed second embedding;
    #    default fast path with bf16 output (review: flip it on where tolerated).
    x_j1 = jax.random.normal(k2, (2, 8, 8, 2), jnp.float32)
    x_j2 = jax.random.normal(k3, (2, 8, 4, 1), jnp.float32)
    out_jssp = edge_adapter_forward(params, [x_j1, x_j2],
                                    {"problem_name": "jssp"},
                                    out_dtype=jnp.bfloat16)
    jax.block_until_ready(out_jssp[0])
    jax.block_until_ready(out_jssp[2])
    jax.block_until_ready(out_jssp[3])
    ref_j1 = _ref_project(x_j1, params["jssp1"], Wt, b)
    ref_j2 = _ref_project(x_j2, params["jssp2"], Wt, b)
    assert out_jssp[1] is None
    assert out_jssp[0].dtype == jnp.bfloat16
    assert out_jssp[0].shape == (2, 8, 8, dim_emb)
    assert out_jssp[2].shape == (2, 4, 8, dim_emb)
    assert jnp.allclose(out_jssp[0].astype(jnp.float32), ref_j1,
                        rtol=5e-2, atol=1e-1)
    assert jnp.allclose(out_jssp[2].astype(jnp.float32),
                        jnp.swapaxes(ref_j2, 1, 2), rtol=5e-2, atol=1e-1)
    assert jnp.allclose(out_jssp[3].astype(jnp.float32), ref_j2,
                        rtol=5e-2, atol=1e-1)

    print("KERNEL_OK")
</pallas_src>

<mosaic_0001>
module attributes {stable_mosaic.version = 11 : i64} {
  func.func @_edge_adapter_kernel(%arg0: i32, %arg1: memref<16x32xf32, #tpu.memory_space<vmem>>, %arg2: memref<32x512xf32, #tpu.memory_space<vmem>>, %arg3: memref<1x512xf32, #tpu.memory_space<vmem>>, %arg4: memref<16x512xf32, #tpu.memory_space<vmem>>) attributes {dimension_semantics = [#tpu.dimension_semantics<parallel>], iteration_bounds = array<i64: 2>, scalar_prefetch = 0 : i64, scratch_operands = 0 : i64, tpu.core_type = #tpu.core_type<tc>, window_params = [{transform_indices = @transform_0, window_bounds = array<i64: 16, 32>}, {pipeline_mode = #tpu.pipeline_mode<synchronous>, transform_indices = @transform_1, window_bounds = array<i64: 32, 512>}, {pipeline_mode = #tpu.pipeline_mode<synchronous>, transform_indices = @transform_2, window_bounds = array<i64: 1, 512>}, {transform_indices = @transform_3, window_bounds = array<i64: 16, 512>}]} {
    %c0 = arith.constant 0 : index
    %c0_0 = arith.constant 0 : index
    %0 = vector.load %arg1[%c0, %c0_0] : memref<16x32xf32, #tpu.memory_space<vmem>>, vector<16x32xf32>
    %c0_1 = arith.constant 0 : index
    %c0_2 = arith.constant 0 : index
    %1 = vector.load %arg2[%c0_1, %c0_2] : memref<32x512xf32, #tpu.memory_space<vmem>>, vector<32x512xf32>
    %2 = arith.truncf %0 : vector<16x32xf32> to vector<16x32xbf16>
    %3 = arith.truncf %1 : vector<32x512xf32> to vector<32x512xbf16>
    %cst = arith.constant dense<0.000000e+00> : vector<16x512xf32>
    %4 = tpu.matmul %2, %3, %cst {dimension_numbers = #tpu.dot_dimension_numbers<[1], [0], [0], [1], [0, 0, 1, 1], [], []>} : vector<16x32xbf16>, vector<32x512xbf16>, vector<16x512xf32> -> vector<16x512xf32>
    %c0_3 = arith.constant 0 : index
    %c0_4 = arith.constant 0 : index
    %5 = vector.load %arg3[%c0_3, %c0_4] : memref<1x512xf32, #tpu.memory_space<vmem>>, vector<1x512xf32>
    %6 = vector.broadcast %5 : vector<1x512xf32> to vector<16x512xf32>
    %7 = arith.addf %4, %6 : vector<16x512xf32>
    %cst_5 = arith.constant 0.000000e+00 : f32
    %8 = vector.broadcast %cst_5 : f32 to vector<16x512xf32>
    %9 = arith.maximumf %7, %8 : vector<16x512xf32>
    %c0_6 = arith.constant 0 : index
    %c0_7 = arith.constant 0 : index
    %10 = vector.load %arg4[%c0_6, %c0_7] : memref<16x512xf32, #tpu.memory_space<vmem>>, vector<16x512xf32>
    tpu.vector_store %arg4[%c0_6, %c0_7], %9 {strides = array<i32>} : memref<16x512xf32, #tpu.memory_space<vmem>>, vector<16x512xf32>,
    return
  }
  func.func @transform_0(%arg0: i32) -> (i32, i32) {
    %c0_i32 = arith.constant 0 : i32
    %c0_i32_0 = arith.constant 0 : i32
    return %arg0, %c0_i32 : i32, i32
  }
  func.func @transform_1(%arg0: i32) -> (i32, i32) {
    %c0_i32 = arith.constant 0 : i32
    %c0_i32_0 = arith.constant 0 : i32
    %c0_i32_1 = arith.constant 0 : i32
    return %c0_i32, %c0_i32_0 : i32, i32
  }
  func.func @transform_2(%arg0: i32) -> (i32, i32) {
    %c0_i32 = arith.constant 0 : i32
    %c0_i32_0 = arith.constant 0 : i32
    %c0_i32_1 = arith.constant 0 : i32
    return %c0_i32, %c0_i32_0 : i32, i32
  }
  func.func @transform_3(%arg0: i32) -> (i32, i32) {
    %c0_i32 = arith.constant 0 : i32
    %c0_i32_0 = arith.constant 0 : i32
    return %arg0, %c0_i32 : i32, i32
  }
}

</mosaic_0001>

<llo_original>
// kernel: tpu_custom_call.1
$region0: #{tpu_custom_call.1}
  #allocation0 [shape = 'u32[]', space=smem, size = 0x4, offset = 0x4, fixed_abs, tag = 'smem constant byte address 0x4 - core index']
  #allocation1 [shape = 'u32[72,128]{1,0:T(1,128)}', space=vmem, size = 0x9000, scoped, tag = 'internal scratch']
  %s0 = inlined_call_operand.hbm [shape: f32[32,32], index: 0, kind: input, shape index: {}]
  %s1 = inlined_call_operand.hbm [shape: f32[32,512], index: 1, kind: input, shape index: {}]
  %s2 = inlined_call_operand.hbm [shape: f32[1,512], index: 2, kind: input, shape index: {}]
  %s3 = inlined_call_operand.hbm [shape: f32[32,512], index: 3, kind: output, shape index: {}]
  %s4 = sld [smem:[#allocation0]]
  $region57: #{tpu_custom_call.1} parent=0
    _
  %s6 = ssub.s32 1, %s4
  %s7 = scalar_select 0, %s6, %s4
  $region1: #{tpu_custom_call.1} parent=0
    #allocation2 [shape = 'u8[16384]{0}', space=vmem, size = 0x4000, scoped, tag = 'input window, operand 0']
    #allocation3 [shape = 's32[2]{0}', space=sflag, size = 0x8, scoped, tag = 'scoped memory for tpu_custom_call.1']
    #allocation4 [shape = 's32[2]{0}', space=sflag, size = 0x8, scoped, tag = 'scoped memory for tpu_custom_call.1']
    #allocation5 [shape = 'u8[65536]{0}', space=vmem, size = 0x10000, scoped, tag = 'input window, operand 1, single buffered']
    #allocation6 [shape = 's32[1]{0}', space=sflag, size = 0x4, scoped, tag = 'scoped memory for tpu_custom_call.1']
    #allocation7 [shape = 'u8[2048]{0}', space=vmem, size = 0x800, scoped, tag = 'input window, operand 2, single buffered']
    #allocation8 [shape = 'u8[65536]{0}', space=vmem, size = 0x10000, scoped, tag = 'output window, operand 0']
    %8 = vsyncpa [#allocation3], 0
    %s9 = scalar_lea.sflag [#allocation3], 1
    %10 = vsyncpa %s9, 0
    %11 = vsyncpa [#allocation6], 0
    %12 = vsyncpa [#allocation4], 0
    %s13 = scalar_lea.sflag [#allocation4], 1
    %14 = vsyncpa %s13, 0
    loop: start=0, step=1, limit=4
    $region2: #{tpu_custom_call.1} parent=1 // loop_pre_header
      _
    $region3: #{tpu_custom_call.1} parent=1 // loop_header
      %s16 = sphi 0, %s20
      %p17 = scmp.ge.s32.totalorder %s16, 4
      %s26 = sphi 0, %s28
      %s29 = sphi 0, %s26
      %s30 = sphi 0, %s29
      %s46 = sphi 0, %s30
      %s50 = sphi 0, %s50
      %s52 = sphi 0, %s50
      %s53 = sphi 0, %s52
      %s67 = sphi 0, %s53
      %s71 = sphi 0, %s71
      %s73 = sphi 0, %s71
      %s74 = sphi 0, %s73
      %s88 = sphi 0, %s74
      %s94 = sphi 0, %s96
      %s97 = sphi 0, %s94
      %s98 = sphi 0, %s97
      %s114 = sphi 0, %s98
    $region4: #{tpu_custom_call.1} parent=1 // loop_header_branch
      %19 = sbr.rel (%p17) target = $region8
    $region5: #{tpu_custom_call.1} parent=1 // loop_body
      %s21 = ssub.s32 %s16, 1
      %s22 = ssub.s32 %s16, 2
      %s23 = sadd.s32 %s16, 1
      %s24 = ssub.s32 %s16, %s23
      %p25 = scmp.eq.s32.totalorder %s24, 0
      %s27 = sadd.s32 %s26, 1
      %s28 = scalar_select %p25, %s26, %s27
      %p31 = pneg %p25
      %p32 = scmp.eq.s32.totalorder %s16, 1
      %p33 = por %p31, %p32
      %p34 = scmp.ne.s32.totalorder %s26, %s29
      %p35 = scmp.eq.s32.totalorder %s16, 0
      %p36 = por %p34, %p35
      %p37 = scmp.ne.s32.totalorder %s26, %s29
      %p38 = scmp.eq.s32.totalorder %s21, 1
      %p39 = por %p37, %p38
      %p40 = scmp.ne.s32.totalorder %s29, %s30
      %p41 = scmp.eq.s32.totalorder %s21, 0
      %p42 = por %p40, %p41
      %p43 = scmp.ne.s32.totalorder %s29, %s30
      %p44 = scmp.eq.s32.totalorder %s22, 1
      %p45 = por %p43, %p44
      %p47 = scmp.ne.s32.totalorder %s30, %s46
      %p48 = scmp.eq.s32.totalorder %s22, 0
      %p49 = por %p47, %p48
      %s51 = sadd.s32 %s50, 1
      %p54 = scmp.eq.s32.totalorder %s16, 1
      %p55 = scmp.ne.s32.totalorder %s50, %s52
      %p56 = scmp.eq.s32.totalorder %s16, 0
      %p57 = por %p55, %p56
      %p58 = scmp.ne.s32.totalorder %s50, %s52
      %p59 = scmp.eq.s32.totalorder %s21, 1
      %p60 = por %p58, %p59
      %p61 = scmp.ne.s32.totalorder %s52, %s53
      %p62 = scmp.eq.s32.totalorder %s21, 0
      %p63 = por %p61, %p62
      %p64 = scmp.ne.s32.totalorder %s52, %s53
      %p65 = scmp.eq.s32.totalorder %s22, 1
      %p66 = por %p64, %p65
      %p68 = scmp.ne.s32.totalorder %s53, %s67
      %p69 = scmp.eq.s32.totalorder %s22, 0
      %p70 = por %p68, %p69
      %s72 = sadd.s32 %s71, 1
      %p75 = scmp.eq.s32.totalorder %s16, 1
      %p76 = scmp.ne.s32.totalorder %s71, %s73
      %p77 = scmp.eq.s32.totalorder %s16, 0
      %p78 = por %p76, %p77
      %p79 = scmp.ne.s32.totalorder %s71, %s73
      %p80 = scmp.eq.s32.totalorder %s21, 1
      %p81 = por %p79, %p80
      %p82 = scmp.ne.s32.totalorder %s73, %s74
      %p83 = scmp.eq.s32.totalorder %s21, 0
      %p84 = por %p82, %p83
      %p85 = scmp.ne.s32.totalorder %s73, %s74
      %p86 = scmp.eq.s32.totalorder %s22, 1
      %p87 = por %p85, %p86
      %p89 = scmp.ne.s32.totalorder %s74, %s88
      %p90 = scmp.eq.s32.totalorder %s22, 0
      %p91 = por %p89, %p90
      %s92 = ssub.s32 %s16, %s23
      %p93 = scmp.eq.s32.totalorder %s92, 0
      %s95 = sadd.s32 %s94, 1
      %s96 = scalar_select %p93, %s94, %s95
      %p99 = pneg %p93
      %p100 = scmp.eq.s32.totalorder %s16, 1
      %p101 = por %p99, %p100
      %p102 = scmp.ne.s32.totalorder %s94, %s97
      %p103 = scmp.eq.s32.totalorder %s16, 0
      %p104 = por %p102, %p103
      %p105 = scmp.ne.s32.totalorder %s94, %s97
      %p106 = scmp.eq.s32.totalorder %s21, 1
      %p107 = por %p105, %p106
      %p108 = scmp.ne.s32.totalorder %s97, %s98
      %p109 = scmp.eq.s32.totalorder %s21, 0
      %p110 = por %p108, %p109
      %p111 = scmp.ne.s32.totalorder %s97, %s98
      %p112 = scmp.eq.s32.totalorder %s22, 1
      %p113 = por %p111, %p112
      %p115 = scmp.ne.s32.totalorder %s98, %s114
      %p116 = scmp.eq.s32.totalorder %s22, 0
      %p117 = por %p115, %p116
      %p118 = scmp.le.s32.totalorder 1, %s16
      %p119 = scmp.lt.s32.totalorder %s16, 3
      %p120 = pnand %p118, %p119
      %p121 = pneg %p120
      // Predicated region
      $region9: #{tpu_custom_call.1} parent=5 // pred_check
        _
      $region10: #{tpu_custom_call.1} parent=5 // pred_check_branch
        %123 = sbr.rel (%p120) target = $region12
      $region11: #{tpu_custom_call.1} parent=5 // pred_region
        %s124 = ssub.s32 %s16, 1
        // Predicated region
        $region13: #{tpu_custom_call.1} parent=11 // pred_check
          %p125 = pneg %p63
        $region14: #{tpu_custom_call.1} parent=11 // pred_check_branch
          %127 = sbr.rel (%p125) target = $region16
        $region15: #{tpu_custom_call.1} parent=11 // pred_region
          %129 = vsyncadd [#allocation6], 0
          %s130 = sshll.u32 %s1, 4
          %s131 = int_to_ptr.hbm [resolvable:$true] %s130
          %s132 = sshll.u32 [#allocation5], 4
          %s133 = int_to_ptr.vmem [resolvable:$true] %s132
          %138 = dma.hbm_to_vmem [thread:$0]  %s131, 2048, %s133, [#allocation6], 512, 512, 32
        $region16: #{tpu_custom_call.1} parent=11 // pred_fallthru
          _
        // Predicated region
        $region17: #{tpu_custom_call.1} parent=11 // pred_check
          %p139 = pneg %p84
        $region18: #{tpu_custom_call.1} parent=11 // pred_check_branch
          %141 = sbr.rel (%p139) target = $region20
        $region19: #{tpu_custom_call.1} parent=11 // pred_region
          %143 = vsyncadd [#allocation6], 0
          %s145 = sshll.u32 %s2, 4
          %s146 = int_to_ptr.hbm [resolvable:$true] %s145
          %s147 = sshll.u32 [#allocation7], 4
          %s148 = int_to_ptr.vmem [resolvable:$true] %s147
          %150 = dma.hbm_to_vmem [thread:$0]  %s146, 64, %s148, [#allocation6]
        $region20: #{tpu_custom_call.1} parent=11 // pred_fallthru
          _
      $region12: #{tpu_custom_call.1} parent=5 // pred_fallthru
        _
      %p151 = scmp.lt.s32.totalorder %s16, 2
      // Predicated region
      $region21: #{tpu_custom_call.1} parent=5 // pred_check
        %p152 = pneg %p151
      $region22: #{tpu_custom_call.1} parent=5 // pred_check_branch
        %154 = sbr.rel (%p152) target = $region24
      $region23: #{tpu_custom_call.1} parent=5 // pred_region
        // Predicated region
        $region25: #{tpu_custom_call.1} parent=23 // pred_check
          %p155 = pneg %p36
        $region26: #{tpu_custom_call.1} parent=23 // pred_check_branch
          %157 = sbr.rel (%p155) target = $region28
        $region27: #{tpu_custom_call.1} parent=23 // pred_region
          %s158 = sand.u32 %s26, 1
          %s159 = scalar_lea.sflag [#allocation3], %s158
          %s160 = sand.u32 %s26, 1
          %s161 = smul.addr %s160, 16
          %s162 = scalar_lea.vmem [#allocation2], %s161
          %s163 = smul.u32 2, %s16
          %165 = vsyncadd %s159, 0
          %s166 = smul.addr %s163, 8
          %s167 = scalar_lea.hbm %s0, %s166
          %s168 = sshll.u32 %s167, 4
          %s169 = int_to_ptr.hbm [resolvable:$true] %s168
          %s170 = sshll.u32 %s162, 4
          %s171 = int_to_ptr.vmem [resolvable:$true] %s170
          %176 = dma.hbm_to_vmem [thread:$0]  %s169, 256, %s171, %s159, 128, 128, 8
        $region28: #{tpu_custom_call.1} parent=23 // pred_fallthru
          _
      $region24: #{tpu_custom_call.1} parent=5 // pred_fallthru
        _
      %p177 = scmp.le.s32.totalorder 1, %s16
      %p178 = scmp.lt.s32.totalorder %s16, 3
      %p179 = pnand %p177, %p178
      %p180 = pneg %p179
      // Predicated region
      $region29: #{tpu_custom_call.1} parent=5 // pred_check
        _
      $region30: #{tpu_custom_call.1} parent=5 // pred_check_branch
        %182 = sbr.rel (%p179) target = $region32
      $region31: #{tpu_custom_call.1} parent=5 // pred_region
        %s183 = ssub.s32 %s16, 1
        %s184 = sand.u32 %s29, 1
        %s185 = scalar_lea.sflag [#allocation3], %s184
        %s186 = sand.u32 %s29, 1
        %s187 = smul.addr %s186, 16
        %s188 = scalar_lea.vmem [#allocation2], %s187
        // Predicated region
        $region33: #{tpu_custom_call.1} parent=31 // pred_check
          %p189 = pneg %p42
        $region34: #{tpu_custom_call.1} parent=31 // pred_check_branch
          %191 = sbr.rel (%p189) target = $region36
        $region35: #{tpu_custom_call.1} parent=31 // pred_region
          %193 = dma.done %s185, 256
        $region36: #{tpu_custom_call.1} parent=31 // pred_fallthru
          _
        // Predicated region
        $region37: #{tpu_custom_call.1} parent=31 // pred_check
          %p194 = pneg %p63
        $region38: #{tpu_custom_call.1} parent=31 // pred_check_branch
          %196 = sbr.rel (%p194) target = $region40
        $region39: #{tpu_custom_call.1} parent=31 // pred_region
          %198 = dma.done [#allocation6], 2048
        $region40: #{tpu_custom_call.1} parent=31 // pred_fallthru
          _
        // Predicated region
        $region41: #{tpu_custom_call.1} parent=31 // pred_check
          %p199 = pneg %p84
        $region42: #{tpu_custom_call.1} parent=31 // pred_check_branch
          %201 = sbr.rel (%p199) target = $region44
        $region43: #{tpu_custom_call.1} parent=31 // pred_region
          %203 = dma.done [#allocation6], 64
        $region44: #{tpu_custom_call.1} parent=31 // pred_fallthru
          _
        %s204 = sand.u32 %s29, 1
        %s205 = scalar_lea.sflag [#allocation3], %s204
        %s206 = sand.u32 %s29, 1
        %s207 = smul.addr %s206, 16
        %s208 = scalar_lea.vmem [#allocation2], %s207
        %p209 = pneg %p42
        %p210 = pneg %p39
        %p211 = pneg %p63
        %p212 = pneg %p60
        %p213 = pneg %p84
        %p214 = pneg %p81
        %p215 = pneg %p110
        %p216 = pneg %p107
        %s217 = sand.u32 %s97, 1
        %s218 = scalar_lea.sflag [#allocation4], %s217
        %s219 = sand.u32 %s97, 1
        %s220 = smul.addr %s219, 64
        %s221 = scalar_lea.vmem [#allocation8], %s220
        %s222 = smul.u32 2, %s21
        %s223 = smul.u32 2, %s21
        %v225 = vld [vmem:[%s188] sm:$0xff]
        %v226 = vld [vmem:[%s188 + $0x8] sm:$0xff]
        %v227 = vld [vmem:[#allocation5] sm:$0xff]
        %v228 = vld [vmem:[#allocation5 + $0x8] sm:$0xff]
        %v229 = vld [vmem:[#allocation5 + $0x10] sm:$0xff]
        %v230 = vld [vmem:[#allocation5 + $0x18] sm:$0xff]
        %v231 = vld [vmem:[#allocation5 + $0x20] sm:$0xff]
        %v232 = vld [vmem:[#allocation5 + $0x28] sm:$0xff]
        %v233 = vld [vmem:[#allocation5 + $0x30] sm:$0xff]
        %v234 = vld [vmem:[#allocation5 + $0x38] sm:$0xff]
        %v235 = vld [vmem:[#allocation5 + $0x40] sm:$0xff]
        %v236 = vld [vmem:[#allocation5 + $0x48] sm:$0xff]
        %v237 = vld [vmem:[#allocation5 + $0x50] sm:$0xff]
        %v238 = vld [vmem:[#allocation5 + $0x58] sm:$0xff]
        %v239 = vld [vmem:[#allocation5 + $0x60] sm:$0xff]
        %v240 = vld [vmem:[#allocation5 + $0x68] sm:$0xff]
        %v241 = vld [vmem:[#allocation5 + $0x70] sm:$0xff]
        %v242 = vld [vmem:[#allocation5 + $0x78] sm:$0xff]
        %v243 = vpack.c.bf16 %v226, %v225
        %v244 = vpack.c.bf16 %v231, %v227
        %v245 = vpack.c.bf16 %v232, %v228
        %v246 = vpack.c.bf16 %v233, %v229
        %v247 = vpack.c.bf16 %v234, %v230
        %v248 = vpack.c.bf16 %v239, %v235
        %v249 = vpack.c.bf16 %v240, %v236
        %v250 = vpack.c.bf16 %v241, %v237
        %v251 = vpack.c.bf16 %v242, %v238
        %v252 = vld [vmem:[#allocation7] sm:$0xf]
        %v254 = vperm.slane %v252, 0
        %v255 = vperm.slane %v252, 1
        %v256 = vperm.slane %v252, 2
        %v257 = vperm.slane %v252, 3
        %vm262 = vcmask 261120
        %v264 = vsel %vm262, %v243, 0
        %266 = vmatpush.bf16.msra.mxu0 0
        %267 = vmatpush.bf16.msra.mxu0 0
        %268 = vmatpush.bf16.msra.mxu0 0
        %269 = vmatpush.bf16.msra.mxu0 0
        %270 = vmatpush.bf16.msra.mxu0 0
        %271 = vmatpush.bf16.msra.mxu0 0
        %272 = vmatpush.bf16.msra.mxu0 %v248
        %273 = vmatpush.bf16.msra.mxu0 %v244
        %274 = vmatmul.bf16.gmra.mxu0 %v264
        %v275 = vpop.f32.mrf.mxu0
        %v276 = vadd.f32 %v254, %v275
        %v277 = vpop.f32.mrf.mxu0
        %v278 = vadd.f32 %v254, %v277
        %279 = vdwg.mxu0
        %280 = vmatpush.bf16.msra.mxu0 0
        %281 = vmatpush.bf16.msra.mxu0 0
        %282 = vmatpush.bf16.msra.mxu0 0
        %283 = vmatpush.bf16.msra.mxu0 0
        %284 = vmatpush.bf16.msra.mxu0 0
        %285 = vmatpush.bf16.msra.mxu0 0
        %286 = vmatpush.bf16.msra.mxu0 %v249
        %287 = vmatpush.bf16.msra.mxu0 %v245
        %288 = vmatmul.bf16.gmra.mxu0 %v264
        %v289 = vpop.f32.mrf.mxu0
        %v290 = vadd.f32 %v255, %v289
        %v291 = vpop.f32.mrf.mxu0
        %v292 = vadd.f32 %v255, %v291
        %293 = vdwg.mxu0
        %294 = vmatpush.bf16.msra.mxu0 0
        %295 = vmatpush.bf16.msra.mxu0 0
        %296 = vmatpush.bf16.msra.mxu0 0
        %297 = vmatpush.bf16.msra.mxu0 0
        %298 = vmatpush.bf16.msra.mxu0 0
        %299 = vmatpush.bf16.msra.mxu0 0
        %300 = vmatpush.bf16.msra.mxu0 %v250
        %301 = vmatpush.bf16.msra.mxu0 %v246
        %302 = vmatmul.bf16.gmra.mxu0 %v264
        %v303 = vpop.f32.mrf.mxu0
        %v304 = vadd.f32 %v256, %v303
        %v305 = vpop.f32.mrf.mxu0
        %v306 = vadd.f32 %v256, %v305
        %307 = vdwg.mxu0
        %308 = vmatpush.bf16.msra.mxu0 0
        %309 = vmatpush.bf16.msra.mxu0 0
        %310 = vmatpush.bf16.msra.mxu0 0
        %311 = vmatpush.bf16.msra.mxu0 0
        %312 = vmatpush.bf16.msra.mxu0 0
        %313 = vmatpush.bf16.msra.mxu0 0
        %314 = vmatpush.bf16.msra.mxu0 %v251
        %315 = vmatpush.bf16.msra.mxu0 %v247
        %316 = vmatmul.bf16.gmra.mxu0 %v264
        %v317 = vpop.f32.mrf.mxu0
        %v318 = vadd.f32 %v257, %v317
        %v319 = vpop.f32.mrf.mxu0
        %v320 = vadd.f32 %v257, %v319
        %321 = vdwg.mxu0
        %v322 = vmax.f32 %v276, 0.0
        %v323 = vmax.f32 %v290, 0.0
        %v324 = vmax.f32 %v304, 0.0
        %v325 = vmax.f32 %v318, 0.0
        %v326 = vmax.f32 %v278, 0.0
        %v327 = vmax.f32 %v292, 0.0
        %v328 = vmax.f32 %v306, 0.0
        %v329 = vmax.f32 %v320, 0.0
        %330 = vst [vmem:[%s221] sm:$0xff] %v322
        %331 = vst [vmem:[%s221 + $0x8] sm:$0xff] %v323
        %332 = vst [vmem:[%s221 + $0x10] sm:$0xff] %v324
        %333 = vst [vmem:[%s221 + $0x18] sm:$0xff] %v325
        %334 = vst [vmem:[%s221 + $0x20] sm:$0xff] %v326
        %335 = vst [vmem:[%s221 + $0x28] sm:$0xff] %v327
        %336 = vst [vmem:[%s221 + $0x30] sm:$0xff] %v328
        %337 = vst [vmem:[%s221 + $0x38] sm:$0xff] %v329
        %s338 = sand.u32 %s97, 1
        %s339 = scalar_lea.sflag [#allocation4], %s338
        %s340 = sand.u32 %s97, 1
        %s341 = smul.addr %s340, 64
        %s342 = scalar_lea.vmem [#allocation8], %s341
        // Predicated region
        $region45: #{tpu_custom_call.1} parent=31 // pred_check
          %p343 = pneg %p107
        $region46: #{tpu_custom_call.1} parent=31 // pred_check_branch
          %345 = sbr.rel (%p343) target = $region48
        $region47: #{tpu_custom_call.1} parent=31 // pred_region
          %s346 = smul.u32 2, %s21
          %348 = vsyncadd %s339, 0
          %s349 = smul.addr %s346, 4
          %s350 = smul.addr %s349, 8
          %s351 = scalar_lea.hbm %s3, %s350
          %s352 = sshll.u32 %s342, 4
          %s353 = int_to_ptr.vmem [resolvable:$true] %s352
          %s354 = sshll.u32 %s351, 4
          %s355 = int_to_ptr.hbm [resolvable:$true] %s354
          %360 = dma.vmem_to_hbm [thread:$0]  %s353, 1024, %s355, %s339, 512, 512, 32
        $region48: #{tpu_custom_call.1} parent=31 // pred_fallthru
          _
      $region32: #{tpu_custom_call.1} parent=5 // pred_fallthru
        _
      %p361 = scmp.le.s32.totalorder 2, %s16
      // Predicated region
      $region49: #{tpu_custom_call.1} parent=5 // pred_check
        %p362 = pneg %p361
      $region50: #{tpu_custom_call.1} parent=5 // pred_check_branch
        %364 = sbr.rel (%p362) target = $region52
      $region51: #{tpu_custom_call.1} parent=5 // pred_region
        %s365 = ssub.s32 %s16, 2
        // Predicated region
        $region53: #{tpu_custom_call.1} parent=51 // pred_check
          %p366 = pneg %p113
        $region54: #{tpu_custom_call.1} parent=51 // pred_check_branch
          %368 = sbr.rel (%p366) target = $region56
        $region55: #{tpu_custom_call.1} parent=51 // pred_region
          %s369 = sand.u32 %s98, 1
          %s370 = scalar_lea.sflag [#allocation4], %s369
          %s371 = sand.u32 %s98, 1
          %s372 = smul.addr %s371, 64
          %s373 = scalar_lea.vmem [#allocation8], %s372
          %375 = dma.done %s370, 1024
        $region56: #{tpu_custom_call.1} parent=51 // pred_fallthru
          _
      $region52: #{tpu_custom_call.1} parent=5 // pred_fallthru
        _
    $region6: #{tpu_custom_call.1} parent=1 // loop_footer
      %s20 = sadd.s32 1, %s16
    $region7: #{tpu_custom_call.1} parent=1 // loop_footer_branch
      %15 = sbr.rel target = $region3
    $region8: #{tpu_custom_call.1} parent=1 // loop_exit
      _
    %376 = vsyncpa [#allocation3], 1
    %s377 = scalar_lea.sflag [#allocation3], 1
    %378 = vsyncpa %s377, 1
    %379 = vsyncpa [#allocation6], 1
    %380 = vsyncpa [#allocation4], 1
    %s381 = scalar_lea.sflag [#allocation4], 1
    %382 = vsyncpa %s381, 1

</llo_original>
